<compile_context>
chip_gen: v7x
topology: tpu7x:2x2x1
jax: 0.10.0
libtpu: 0.0.40
codegen_flags: <defaults>
</compile_context>

<pallas_src>
import functools

import jax
import jax.numpy as jnp
from jax.experimental import pallas as pl
from jax.experimental.pallas import tpu as pltpu


# ----------------------------------------------------------------------------
# Fused MMTM kernel
# ----------------------------------------------------------------------------
def mmtm_kernel(xa_ref, xv_ref, wsq_ref, bsq_ref, wex_ref, bex_ref,
                ya_ref, yv_ref, gate_ref, *, c_a, inv_sa, inv_sv):
    """Fused MMTM forward (single block, everything resident in VMEM).

    xa_ref : (B, S_a, C_a)  audio features, spatial on sublanes, channels on lanes
    xv_ref : (B, S_v, C_v)  visual features (B, C, T, H, W) flattened to (B, T*H*W, C)
    wsq_ref: (C_a+C_v, D_out)  fc_squeeze weight (transposed nn.Linear)
    bsq_ref: (1, D_out)
    wex_ref: (D_out, C_a+C_v)  both fc_excite weights concatenated on lanes
    bex_ref: (1, C_a+C_v)
    ya_ref : (B, S_a, C_a)  gated audio
    yv_ref : (B, S_v, C_v)  gated visual
    gate_ref:(B, C_a+C_v)   sigmoid gates (audio | visual), lane-dense slab
    """
    batch = xa_ref.shape[0]

    # --- squeeze: per-sample channel means over the spatial (sublane) axis ---
    rows = []
    for b in range(batch):                       # tiny static unroll (B small)
        sa_b = jnp.sum(xa_ref[b], axis=0, keepdims=True) * inv_sa   # (1, C_a)
        sv_b = jnp.sum(xv_ref[b], axis=0, keepdims=True) * inv_sv   # (1, C_v)
        rows.append(jnp.concatenate([sa_b, sv_b], axis=-1))         # (1, C_a+C_v)
    squeeze = jnp.concatenate(rows, axis=0)                         # (B, C_a+C_v)

    # --- fc_squeeze + ReLU (one MXU call) ---
    exc = jnp.dot(squeeze, wsq_ref[...], preferred_element_type=jnp.float32)
    exc = jnp.maximum(exc + bsq_ref[...], 0.0)                      # (B, D_out)

    # --- both fc_excites fused into ONE MXU call, then sigmoid (EUP) ---
    z = jnp.dot(exc, wex_ref[...], preferred_element_type=jnp.float32) + bex_ref[...]
    gates = jax.nn.sigmoid(z)                                       # (B, C_a+C_v)
    gate_ref[...] = gates

    # --- channel-wise excitation: broadcast gate row over the spatial axis ---
    for b in range(batch):
        g_b = gates[b:b + 1, :]                                     # (1, C_a+C_v)
        ya_ref[b] = xa_ref[b] * g_b[:, :c_a]
        yv_ref[b] = xv_ref[b] * g_b[:, c_a:]


def pallas_mmtm(xa, xv, w_sq, b_sq, w_ex, b_ex):
    """xa: (B,S_a,C_a) f32, xv: (B,S_v,C_v) f32, weights as described above."""
    B, s_a, c_a = xa.shape
    _, s_v, c_v = xv.shape
    c_tot = c_a + c_v
    d_out = w_sq.shape[1]

    flops = (2 * B * c_tot * d_out          # fc_squeeze
             + 2 * B * d_out * c_tot        # both fc_excites (fused)
             + 2 * B * (s_a * c_a + s_v * c_v))  # squeeze reduce + re-scale
    bytes_accessed = 4 * (2 * B * (s_a * c_a + s_v * c_v)
                          + c_tot * d_out + d_out
                          + d_out * c_tot + c_tot
                          + B * c_tot)

    kernel = functools.partial(mmtm_kernel, c_a=c_a,
                               inv_sa=1.0 / s_a, inv_sv=1.0 / s_v)

    return pl.pallas_call(
        kernel,
        out_shape=(
            jax.ShapeDtypeStruct((B, s_a, c_a), jnp.float32),
            jax.ShapeDtypeStruct((B, s_v, c_v), jnp.float32),
            jax.ShapeDtypeStruct((B, c_tot), jnp.float32),
        ),
        in_specs=[
            pl.BlockSpec((B, s_a, c_a), lambda: (0, 0, 0)),
            pl.BlockSpec((B, s_v, c_v), lambda: (0, 0, 0)),
            pl.BlockSpec((c_tot, d_out), lambda: (0, 0)),
            pl.BlockSpec((1, d_out), lambda: (0, 0)),
            pl.BlockSpec((d_out, c_tot), lambda: (0, 0)),
            pl.BlockSpec((1, c_tot), lambda: (0, 0)),
        ],
        out_specs=(
            pl.BlockSpec((B, s_a, c_a), lambda: (0, 0, 0)),
            pl.BlockSpec((B, s_v, c_v), lambda: (0, 0, 0)),
            pl.BlockSpec((B, c_tot), lambda: (0, 0)),
        ),
        compiler_params=pltpu.CompilerParams(vmem_limit_bytes=32 * 1024 * 1024),
        cost_estimate=pl.CostEstimate(flops=flops,
                                      transcendentals=B * c_tot,
                                      bytes_accessed=bytes_accessed),
    )(xa, xv, w_sq, b_sq, w_ex, b_ex)


# ----------------------------------------------------------------------------
# Module wrapper (parameter bookkeeping + layout plumbing in plain JAX)
# ----------------------------------------------------------------------------
class MMTMPallas:
    """MMTM (two-modality squeeze-and-excitation) with a fused Pallas forward."""

    def __init__(self, key, modalities_dims, ratio, modalitys=("audio", "visual")):
        self.modalitys = tuple(modalitys)
        self.modalities_dims = list(modalities_dims)
        total_dim = sum(modalities_dims)
        dim_out = int(2 * total_dim / ratio)
        self.dim_out = dim_out

        k = jax.random.split(key, 6)
        # fc_squeeze: nn.Linear(total_dim, dim_out), stored transposed (D_in, D_out)
        self.w_sq = 0.05 * jax.random.normal(k[0], (total_dim, dim_out), jnp.float32)
        self.b_sq = 0.01 * jax.random.normal(k[1], (1, dim_out), jnp.float32)
        # fc_excites (one per modality), concatenated along the output axis so
        # the kernel performs a single MXU call: (dim_out, C_a + C_v)
        w_ex_a = 0.05 * jax.random.normal(k[2], (dim_out, modalities_dims[0]), jnp.float32)
        w_ex_v = 0.05 * jax.random.normal(k[3], (dim_out, modalities_dims[1]), jnp.float32)
        b_ex_a = 0.01 * jax.random.normal(k[4], (1, modalities_dims[0]), jnp.float32)
        b_ex_v = 0.01 * jax.random.normal(k[5], (1, modalities_dims[1]), jnp.float32)
        self.w_ex = jnp.concatenate([w_ex_a, w_ex_v], axis=1)
        self.b_ex = jnp.concatenate([b_ex_a, b_ex_v], axis=1)

        # detached running statistics (host-side state, as in the PyTorch module)
        self.running_avg_weight = {m: jnp.zeros((d,), jnp.float32)
                                   for m, d in zip(self.modalitys, modalities_dims)}
        self.step = 0

    def __call__(self, data, curation_mode=False, caring_modality=0):
        # TODO(synk): curation_mode / caring_modality (substituting one modality's
        #   gates with its broadcast running_avg_weight) and the 'text' squeeze(2)
        #   path are not implemented; this is the default curation_mode=False
        #   two-stream (audio/visual) path.
        m_a, m_v = self.modalitys
        xa = data[m_a].astype(jnp.float32)            # (B, C_a, H_a, W_a)
        xv = data[m_v].astype(jnp.float32)            # (B*T, C_v, H_v, W_v)

        B, c_a, ha, wa = xa.shape
        bt, c_v, hv, wv = xv.shape
        t = bt // B
        s_a, s_v = ha * wa, t * hv * wv

        # layout plumbing (wrapper-side, mirrors the PyTorch permutes):
        #   audio  (B, C, H, W)    -> (B, H*W, C)
        #   visual (B*T, C, H, W)  -> (B, T, C, H, W) -> (B, T*H*W, C)
        xa_slab = jnp.transpose(xa, (0, 2, 3, 1)).reshape(B, s_a, c_a)
        xv_slab = jnp.transpose(xv.reshape(B, t, c_v, hv, wv),
                                (0, 1, 3, 4, 2)).reshape(B, s_v, c_v)

        ya, yv, gates = pallas_mmtm(xa_slab, xv_slab,
                                    self.w_sq, self.b_sq, self.w_ex, self.b_ex)

        # running-average gate statistics (detached / stateful, outside the kernel)
        g_a, g_v = gates[:, :c_a], gates[:, c_a:]
        for m, g in ((m_a, g_a), (m_v, g_v)):
            self.running_avg_weight[m] = (
                g.mean(axis=0) + self.running_avg_weight[m] * self.step
            ) / (self.step + 1)
        self.step += 1

        out = dict(data)
        out[m_a] = jnp.transpose(ya.reshape(B, ha, wa, c_a), (0, 3, 1, 2))
        out[m_v] = jnp.transpose(yv.reshape(B, t, hv, wv, c_v),
                                 (0, 1, 4, 2, 3)).reshape(bt, c_v, hv, wv)
        return out


# ----------------------------------------------------------------------------
# Pure-JAX reference (torch semantics) for correctness checking
# ----------------------------------------------------------------------------
def mmtm_reference(batch, mmtm):
    m_a, m_v = mmtm.modalitys
    xa = batch[m_a].astype(jnp.float32)           # (B, C_a, H, W)
    xv = batch[m_v].astype(jnp.float32)           # (B*T, C_v, H, W)
    B, c_a = xa.shape[0], xa.shape[1]
    bt, c_v, hv, wv = xv.shape
    t = bt // B
    xv5 = jnp.transpose(xv.reshape(B, t, c_v, hv, wv), (0, 2, 1, 3, 4))  # (B,C,T,H,W)

    sq_a = xa.reshape(B, c_a, -1).mean(axis=-1)
    sq_v = xv5.reshape(B, c_v, -1).mean(axis=-1)
    squeeze = jnp.concatenate([sq_a, sq_v], axis=1)
    exc = jnp.maximum(squeeze @ mmtm.w_sq + mmtm.b_sq, 0.0)
    gates = jax.nn.sigmoid(exc @ mmtm.w_ex + mmtm.b_ex)
    g_a, g_v = gates[:, :c_a], gates[:, c_a:]

    ya = xa * g_a[:, :, None, None]
    yv5 = xv5 * g_v[:, :, None, None, None]
    yv = jnp.transpose(yv5, (0, 2, 1, 3, 4)).reshape(bt, c_v, hv, wv)
    return {m_a: ya, m_v: yv}, gates


if __name__ == "__main__":
    key = jax.random.PRNGKey(0)
    k_a, k_v, k_p = jax.random.split(key, 3)

    # Small shapes consistent with the module's 'mmtm2' layer: MMTM([128, 128], 4)
    # (ResNet18 intermediate features). Channel axis = 128 (lane-dense), spatial
    # flattened axes (16 / 32) are multiples of 8 (sublane-aligned).
    B, T = 4, 2
    C_A = C_V = 128
    audio = jax.random.normal(k_a, (B, C_A, 4, 4), jnp.float32)        # (B, C, H, W)
    visual = jax.random.normal(k_v, (B * T, C_V, 4, 4), jnp.float32)   # (B*T, C, H, W)

    mmtm = MMTMPallas(k_p, modalities_dims=[C_A, C_V], ratio=4,
                      modalitys=("audio", "visual"))

    batch = {"audio": audio, "visual": visual}
    out = mmtm(batch)
    jax.block_until_ready(out["visual"])

    ref_out, ref_gates = mmtm_reference(batch, mmtm)
    assert jnp.allclose(out["audio"], ref_out["audio"], atol=1e-4, rtol=1e-4)
    assert jnp.allclose(out["visual"], ref_out["visual"], atol=1e-4, rtol=1e-4)

    print("KERNEL_OK")
</pallas_src>

<mosaic_0001>
module attributes {stable_mosaic.version = 11 : i64} {
  func.func @mmtm_kernel(%arg0: memref<4x16x128xf32, #tpu.memory_space<vmem>>, %arg1: memref<4x32x128xf32, #tpu.memory_space<vmem>>, %arg2: memref<256x128xf32, #tpu.memory_space<vmem>>, %arg3: memref<1x128xf32, #tpu.memory_space<vmem>>, %arg4: memref<128x256xf32, #tpu.memory_space<vmem>>, %arg5: memref<1x256xf32, #tpu.memory_space<vmem>>, %arg6: memref<4x16x128xf32, #tpu.memory_space<vmem>>, %arg7: memref<4x32x128xf32, #tpu.memory_space<vmem>>, %arg8: memref<4x256xf32, #tpu.memory_space<vmem>>) attributes {dimension_semantics = [], scalar_prefetch = 0 : i64, scratch_operands = 0 : i64, tpu.core_type = #tpu.core_type<tc>} {
    %c0 = arith.constant 0 : index
    %c0_0 = arith.constant 0 : index
    %c0_1 = arith.constant 0 : index
    %0 = vector.load %arg0[%c0, %c0_0, %c0_1] : memref<4x16x128xf32, #tpu.memory_space<vmem>>, vector<1x16x128xf32>
    %1 = vector.shape_cast %0 : vector<1x16x128xf32> to vector<16x128xf32>
    %cst = arith.constant dense<0.000000e+00> : vector<128xf32>
    %2 = vector.multi_reduction <add>, %1, %cst [0] : vector<16x128xf32> to vector<128xf32>
    %3 = vector.shape_cast %2 : vector<128xf32> to vector<1x128xf32>
    %cst_2 = arith.constant 6.250000e-02 : f32
    %4 = vector.broadcast %cst_2 : f32 to vector<1x128xf32>
    %5 = arith.mulf %3, %4 : vector<1x128xf32>
    %c0_3 = arith.constant 0 : index
    %c0_4 = arith.constant 0 : index
    %c0_5 = arith.constant 0 : index
    %6 = vector.load %arg1[%c0_3, %c0_4, %c0_5] : memref<4x32x128xf32, #tpu.memory_space<vmem>>, vector<1x32x128xf32>
    %7 = vector.shape_cast %6 : vector<1x32x128xf32> to vector<32x128xf32>
    %cst_6 = arith.constant dense<0.000000e+00> : vector<128xf32>
    %8 = vector.multi_reduction <add>, %7, %cst_6 [0] : vector<32x128xf32> to vector<128xf32>
    %9 = vector.shape_cast %8 : vector<128xf32> to vector<1x128xf32>
    %cst_7 = arith.constant 3.125000e-02 : f32
    %10 = vector.broadcast %cst_7 : f32 to vector<1x128xf32>
    %11 = arith.mulf %9, %10 : vector<1x128xf32>
    %12 = tpu.concatenate %5, %11 in 1 : vector<1x128xf32>, vector<1x128xf32> -> vector<1x256xf32>
    %c1 = arith.constant 1 : index
    %c0_8 = arith.constant 0 : index
    %c0_9 = arith.constant 0 : index
    %13 = vector.load %arg0[%c1, %c0_8, %c0_9] : memref<4x16x128xf32, #tpu.memory_space<vmem>>, vector<1x16x128xf32>
    %14 = vector.shape_cast %13 : vector<1x16x128xf32> to vector<16x128xf32>
    %cst_10 = arith.constant dense<0.000000e+00> : vector<128xf32>
    %15 = vector.multi_reduction <add>, %14, %cst_10 [0] : vector<16x128xf32> to vector<128xf32>
    %16 = vector.shape_cast %15 : vector<128xf32> to vector<1x128xf32>
    %cst_11 = arith.constant 6.250000e-02 : f32
    %17 = vector.broadcast %cst_11 : f32 to vector<1x128xf32>
    %18 = arith.mulf %16, %17 : vector<1x128xf32>
    %c1_12 = arith.constant 1 : index
    %c0_13 = arith.constant 0 : index
    %c0_14 = arith.constant 0 : index
    %19 = vector.load %arg1[%c1_12, %c0_13, %c0_14] : memref<4x32x128xf32, #tpu.memory_space<vmem>>, vector<1x32x128xf32>
    %20 = vector.shape_cast %19 : vector<1x32x128xf32> to vector<32x128xf32>
    %cst_15 = arith.constant dense<0.000000e+00> : vector<128xf32>
    %21 = vector.multi_reduction <add>, %20, %cst_15 [0] : vector<32x128xf32> to vector<128xf32>
    %22 = vector.shape_cast %21 : vector<128xf32> to vector<1x128xf32>
    %cst_16 = arith.constant 3.125000e-02 : f32
    %23 = vector.broadcast %cst_16 : f32 to vector<1x128xf32>
    %24 = arith.mulf %22, %23 : vector<1x128xf32>
    %25 = tpu.concatenate %18, %24 in 1 : vector<1x128xf32>, vector<1x128xf32> -> vector<1x256xf32>
    %c2 = arith.constant 2 : index
    %c0_17 = arith.constant 0 : index
    %c0_18 = arith.constant 0 : index
    %26 = vector.load %arg0[%c2, %c0_17, %c0_18] : memref<4x16x128xf32, #tpu.memory_space<vmem>>, vector<1x16x128xf32>
    %27 = vector.shape_cast %26 : vector<1x16x128xf32> to vector<16x128xf32>
    %cst_19 = arith.constant dense<0.000000e+00> : vector<128xf32>
    %28 = vector.multi_reduction <add>, %27, %cst_19 [0] : vector<16x128xf32> to vector<128xf32>
    %29 = vector.shape_cast %28 : vector<128xf32> to vector<1x128xf32>
    %cst_20 = arith.constant 6.250000e-02 : f32
    %30 = vector.broadcast %cst_20 : f32 to vector<1x128xf32>
    %31 = arith.mulf %29, %30 : vector<1x128xf32>
    %c2_21 = arith.constant 2 : index
    %c0_22 = arith.constant 0 : index
    %c0_23 = arith.constant 0 : index
    %32 = vector.load %arg1[%c2_21, %c0_22, %c0_23] : memref<4x32x128xf32, #tpu.memory_space<vmem>>, vector<1x32x128xf32>
    %33 = vector.shape_cast %32 : vector<1x32x128xf32> to vector<32x128xf32>
    %cst_24 = arith.constant dense<0.000000e+00> : vector<128xf32>
    %34 = vector.multi_reduction <add>, %33, %cst_24 [0] : vector<32x128xf32> to vector<128xf32>
    %35 = vector.shape_cast %34 : vector<128xf32> to vector<1x128xf32>
    %cst_25 = arith.constant 3.125000e-02 : f32
    %36 = vector.broadcast %cst_25 : f32 to vector<1x128xf32>
    %37 = arith.mulf %35, %36 : vector<1x128xf32>
    %38 = tpu.concatenate %31, %37 in 1 : vector<1x128xf32>, vector<1x128xf32> -> vector<1x256xf32>
    %c3 = arith.constant 3 : index
    %c0_26 = arith.constant 0 : index
    %c0_27 = arith.constant 0 : index
    %39 = vector.load %arg0[%c3, %c0_26, %c0_27] : memref<4x16x128xf32, #tpu.memory_space<vmem>>, vector<1x16x128xf32>
    %40 = vector.shape_cast %39 : vector<1x16x128xf32> to vector<16x128xf32>
    %cst_28 = arith.constant dense<0.000000e+00> : vector<128xf32>
    %41 = vector.multi_reduction <add>, %40, %cst_28 [0] : vector<16x128xf32> to vector<128xf32>
    %42 = vector.shape_cast %41 : vector<128xf32> to vector<1x128xf32>
    %cst_29 = arith.constant 6.250000e-02 : f32
    %43 = vector.broadcast %cst_29 : f32 to vector<1x128xf32>
    %44 = arith.mulf %42, %43 : vector<1x128xf32>
    %c3_30 = arith.constant 3 : index
    %c0_31 = arith.constant 0 : index
    %c0_32 = arith.constant 0 : index
    %45 = vector.load %arg1[%c3_30, %c0_31, %c0_32] : memref<4x32x128xf32, #tpu.memory_space<vmem>>, vector<1x32x128xf32>
    %46 = vector.shape_cast %45 : vector<1x32x128xf32> to vector<32x128xf32>
    %cst_33 = arith.constant dense<0.000000e+00> : vector<128xf32>
    %47 = vector.multi_reduction <add>, %46, %cst_33 [0] : vector<32x128xf32> to vector<128xf32>
    %48 = vector.shape_cast %47 : vector<128xf32> to vector<1x128xf32>
    %cst_34 = arith.constant 3.125000e-02 : f32
    %49 = vector.broadcast %cst_34 : f32 to vector<1x128xf32>
    %50 = arith.mulf %48, %49 : vector<1x128xf32>
    %51 = tpu.concatenate %44, %50 in 1 : vector<1x128xf32>, vector<1x128xf32> -> vector<1x256xf32>
    %52 = tpu.concatenate %12, %25, %38, %51 in 0 : vector<1x256xf32>, vector<1x256xf32>, vector<1x256xf32>, vector<1x256xf32> -> vector<4x256xf32>
    %c0_35 = arith.constant 0 : index
    %c0_36 = arith.constant 0 : index
    %53 = vector.load %arg2[%c0_35, %c0_36] : memref<256x128xf32, #tpu.memory_space<vmem>>, vector<256x128xf32>
    %cst_37 = arith.constant dense<0.000000e+00> : vector<4x128xf32>
    %54 = tpu.matmul %52, %53, %cst_37 {dimension_numbers = #tpu.dot_dimension_numbers<[1], [0], [0], [1], [0, 0, 1, 1], [], []>} : vector<4x256xf32>, vector<256x128xf32>, vector<4x128xf32> -> vector<4x128xf32>
    %c0_38 = arith.constant 0 : index
    %c0_39 = arith.constant 0 : index
    %55 = vector.load %arg3[%c0_38, %c0_39] : memref<1x128xf32, #tpu.memory_space<vmem>>, vector<1x128xf32>
    %56 = vector.broadcast %55 : vector<1x128xf32> to vector<4x128xf32>
    %57 = arith.addf %54, %56 : vector<4x128xf32>
    %cst_40 = arith.constant 0.000000e+00 : f32
    %58 = vector.broadcast %cst_40 : f32 to vector<4x128xf32>
    %59 = arith.maximumf %57, %58 : vector<4x128xf32>
    %c0_41 = arith.constant 0 : index
    %c0_42 = arith.constant 0 : index
    %60 = vector.load %arg4[%c0_41, %c0_42] : memref<128x256xf32, #tpu.memory_space<vmem>>, vector<128x256xf32>
    %cst_43 = arith.constant dense<0.000000e+00> : vector<4x256xf32>
    %61 = tpu.matmul %59, %60, %cst_43 {dimension_numbers = #tpu.dot_dimension_numbers<[1], [0], [0], [1], [0, 0, 1, 1], [], []>} : vector<4x128xf32>, vector<128x256xf32>, vector<4x256xf32> -> vector<4x256xf32>
    %c0_44 = arith.constant 0 : index
    %c0_45 = arith.constant 0 : index
    %62 = vector.load %arg5[%c0_44, %c0_45] : memref<1x256xf32, #tpu.memory_space<vmem>>, vector<1x256xf32>
    %63 = vector.broadcast %62 : vector<1x256xf32> to vector<4x256xf32>
    %64 = arith.addf %61, %63 : vector<4x256xf32>
    %65 = arith.negf %64 : vector<4x256xf32>
    %66 = math.exp %65 : vector<4x256xf32>
    %cst_46 = arith.constant 1.000000e+00 : f32
    %67 = vector.broadcast %cst_46 : f32 to vector<4x256xf32>
    %68 = arith.addf %67, %66 : vector<4x256xf32>
    %69 = arith.divf %67, %68 : vector<4x256xf32>
    %c0_47 = arith.constant 0 : index
    %c0_48 = arith.constant 0 : index
    %70 = vector.load %arg8[%c0_47, %c0_48] : memref<4x256xf32, #tpu.memory_space<vmem>>, vector<4x256xf32>
    tpu.vector_store %arg8[%c0_47, %c0_48], %69 {strides = array<i32>} : memref<4x256xf32, #tpu.memory_space<vmem>>, vector<4x256xf32>,
    %71 = vector.extract_strided_slice %69 {offsets = [0, 0], sizes = [1, 256], strides = [1, 1]} : vector<4x256xf32> to vector<1x256xf32>
    %c0_49 = arith.constant 0 : index
    %c0_50 = arith.constant 0 : index
    %c0_51 = arith.constant 0 : index
    %72 = vector.load %arg0[%c0_49, %c0_50, %c0_51] : memref<4x16x128xf32, #tpu.memory_space<vmem>>, vector<1x16x128xf32>
    %73 = vector.shape_cast %72 : vector<1x16x128xf32> to vector<16x128xf32>
    %74 = vector.extract_strided_slice %71 {offsets = [0, 0], sizes = [1, 128], strides = [1, 1]} : vector<1x256xf32> to vector<1x128xf32>
    %75 = vector.broadcast %74 : vector<1x128xf32> to vector<16x128xf32>
    %76 = arith.mulf %73, %75 : vector<16x128xf32>
    %c0_52 = arith.constant 0 : index
    %c0_53 = arith.constant 0 : index
    %c0_54 = arith.constant 0 : index
    %77 = vector.load %arg6[%c0_52, %c0_53, %c0_54] : memref<4x16x128xf32, #tpu.memory_space<vmem>>, vector<1x16x128xf32>
    %78 = vector.shape_cast %77 : vector<1x16x128xf32> to vector<16x128xf32>
    %79 = vector.shape_cast %76 : vector<16x128xf32> to vector<1x16x128xf32>
    tpu.vector_store %arg6[%c0_52, %c0_53, %c0_54], %79 {strides = array<i32>} : memref<4x16x128xf32, #tpu.memory_space<vmem>>, vector<1x16x128xf32>,
    %c0_55 = arith.constant 0 : index
    %c0_56 = arith.constant 0 : index
    %c0_57 = arith.constant 0 : index
    %80 = vector.load %arg1[%c0_55, %c0_56, %c0_57] : memref<4x32x128xf32, #tpu.memory_space<vmem>>, vector<1x32x128xf32>
    %81 = vector.shape_cast %80 : vector<1x32x128xf32> to vector<32x128xf32>
    %82 = vector.extract_strided_slice %71 {offsets = [0, 128], sizes = [1, 128], strides = [1, 1]} : vector<1x256xf32> to vector<1x128xf32>
    %83 = vector.broadcast %82 : vector<1x128xf32> to vector<32x128xf32>
    %84 = arith.mulf %81, %83 : vector<32x128xf32>
    %c0_58 = arith.constant 0 : index
    %c0_59 = arith.constant 0 : index
    %c0_60 = arith.constant 0 : index
    %85 = vector.load %arg7[%c0_58, %c0_59, %c0_60] : memref<4x32x128xf32, #tpu.memory_space<vmem>>, vector<1x32x128xf32>
    %86 = vector.shape_cast %85 : vector<1x32x128xf32> to vector<32x128xf32>
    %87 = vector.shape_cast %84 : vector<32x128xf32> to vector<1x32x128xf32>
    tpu.vector_store %arg7[%c0_58, %c0_59, %c0_60], %87 {strides = array<i32>} : memref<4x32x128xf32, #tpu.memory_space<vmem>>, vector<1x32x128xf32>,
    %88 = vector.extract_strided_slice %69 {offsets = [1, 0], sizes = [1, 256], strides = [1, 1]} : vector<4x256xf32> to vector<1x256xf32>
    %c1_61 = arith.constant 1 : index
    %c0_62 = arith.constant 0 : index
    %c0_63 = arith.constant 0 : index
    %89 = vector.load %arg0[%c1_61, %c0_62, %c0_63] : memref<4x16x128xf32, #tpu.memory_space<vmem>>, vector<1x16x128xf32>
    %90 = vector.shape_cast %89 : vector<1x16x128xf32> to vector<16x128xf32>
    %91 = vector.extract_strided_slice %88 {offsets = [0, 0], sizes = [1, 128], strides = [1, 1]} : vector<1x256xf32> to vector<1x128xf32>
    %92 = vector.broadcast %91 : vector<1x128xf32> to vector<16x128xf32>
    %93 = arith.mulf %90, %92 : vector<16x128xf32>
    %c1_64 = arith.constant 1 : index
    %c0_65 = arith.constant 0 : index
    %c0_66 = arith.constant 0 : index
    %94 = vector.load %arg6[%c1_64, %c0_65, %c0_66] : memref<4x16x128xf32, #tpu.memory_space<vmem>>, vector<1x16x128xf32>
    %95 = vector.shape_cast %94 : vector<1x16x128xf32> to vector<16x128xf32>
    %96 = vector.shape_cast %93 : vector<16x128xf32> to vector<1x16x128xf32>
    tpu.vector_store %arg6[%c1_64, %c0_65, %c0_66], %96 {strides = array<i32>} : memref<4x16x128xf32, #tpu.memory_space<vmem>>, vector<1x16x128xf32>,
    %c1_67 = arith.constant 1 : index
    %c0_68 = arith.constant 0 : index
    %c0_69 = arith.constant 0 : index
    %97 = vector.load %arg1[%c1_67, %c0_68, %c0_69] : memref<4x32x128xf32, #tpu.memory_space<vmem>>, vector<1x32x128xf32>
    %98 = vector.shape_cast %97 : vector<1x32x128xf32> to vector<32x128xf32>
    %99 = vector.extract_strided_slice %88 {offsets = [0, 128], sizes = [1, 128], strides = [1, 1]} : vector<1x256xf32> to vector<1x128xf32>
    %100 = vector.broadcast %99 : vector<1x128xf32> to vector<32x128xf32>
    %101 = arith.mulf %98, %100 : vector<32x128xf32>
    %c1_70 = arith.constant 1 : index
    %c0_71 = arith.constant 0 : index
    %c0_72 = arith.constant 0 : index
    %102 = vector.load %arg7[%c1_70, %c0_71, %c0_72] : memref<4x32x128xf32, #tpu.memory_space<vmem>>, vector<1x32x128xf32>
    %103 = vector.shape_cast %102 : vector<1x32x128xf32> to vector<32x128xf32>
    %104 = vector.shape_cast %101 : vector<32x128xf32> to vector<1x32x128xf32>
    tpu.vector_store %arg7[%c1_70, %c0_71, %c0_72], %104 {strides = array<i32>} : memref<4x32x128xf32, #tpu.memory_space<vmem>>, vector<1x32x128xf32>,
    %105 = vector.extract_strided_slice %69 {offsets = [2, 0], sizes = [1, 256], strides = [1, 1]} : vector<4x256xf32> to vector<1x256xf32>
    %c2_73 = arith.constant 2 : index
    %c0_74 = arith.constant 0 : index
    %c0_75 = arith.constant 0 : index
    %106 = vector.load %arg0[%c2_73, %c0_74, %c0_75] : memref<4x16x128xf32, #tpu.memory_space<vmem>>, vector<1x16x128xf32>
    %107 = vector.shape_cast %106 : vector<1x16x128xf32> to vector<16x128xf32>
    %108 = vector.extract_strided_slice %105 {offsets = [0, 0], sizes = [1, 128], strides = [1, 1]} : vector<1x256xf32> to vector<1x128xf32>
    %109 = vector.broadcast %108 : vector<1x128xf32> to vector<16x128xf32>
    %110 = arith.mulf %107, %109 : vector<16x128xf32>
    %c2_76 = arith.constant 2 : index
    %c0_77 = arith.constant 0 : index
    %c0_78 = arith.constant 0 : index
    %111 = vector.load %arg6[%c2_76, %c0_77, %c0_78] : memref<4x16x128xf32, #tpu.memory_space<vmem>>, vector<1x16x128xf32>
    %112 = vector.shape_cast %111 : vector<1x16x128xf32> to vector<16x128xf32>
    %113 = vector.shape_cast %110 : vector<16x128xf32> to vector<1x16x128xf32>
    tpu.vector_store %arg6[%c2_76, %c0_77, %c0_78], %113 {strides = array<i32>} : memref<4x16x128xf32, #tpu.memory_space<vmem>>, vector<1x16x128xf32>,
    %c2_79 = arith.constant 2 : index
    %c0_80 = arith.constant 0 : index
    %c0_81 = arith.constant 0 : index
    %114 = vector.load %arg1[%c2_79, %c0_80, %c0_81] : memref<4x32x128xf32, #tpu.memory_space<vmem>>, vector<1x32x128xf32>
    %115 = vector.shape_cast %114 : vector<1x32x128xf32> to vector<32x128xf32>
    %116 = vector.extract_strided_slice %105 {offsets = [0, 128], sizes = [1, 128], strides = [1, 1]} : vector<1x256xf32> to vector<1x128xf32>
    %117 = vector.broadcast %116 : vector<1x128xf32> to vector<32x128xf32>
    %118 = arith.mulf %115, %117 : vector<32x128xf32>
    %c2_82 = arith.constant 2 : index
    %c0_83 = arith.constant 0 : index
    %c0_84 = arith.constant 0 : index
    %119 = vector.load %arg7[%c2_82, %c0_83, %c0_84] : memref<4x32x128xf32, #tpu.memory_space<vmem>>, vector<1x32x128xf32>
    %120 = vector.shape_cast %119 : vector<1x32x128xf32> to vector<32x128xf32>
    %121 = vector.shape_cast %118 : vector<32x128xf32> to vector<1x32x128xf32>
    tpu.vector_store %arg7[%c2_82, %c0_83, %c0_84], %121 {strides = array<i32>} : memref<4x32x128xf32, #tpu.memory_space<vmem>>, vector<1x32x128xf32>,
    %122 = vector.extract_strided_slice %69 {offsets = [3, 0], sizes = [1, 256], strides = [1, 1]} : vector<4x256xf32> to vector<1x256xf32>
    %c3_85 = arith.constant 3 : index
    %c0_86 = arith.constant 0 : index
    %c0_87 = arith.constant 0 : index
    %123 = vector.load %arg0[%c3_85, %c0_86, %c0_87] : memref<4x16x128xf32, #tpu.memory_space<vmem>>, vector<1x16x128xf32>
    %124 = vector.shape_cast %123 : vector<1x16x128xf32> to vector<16x128xf32>
    %125 = vector.extract_strided_slice %122 {offsets = [0, 0], sizes = [1, 128], strides = [1, 1]} : vector<1x256xf32> to vector<1x128xf32>
    %126 = vector.broadcast %125 : vector<1x128xf32> to vector<16x128xf32>
    %127 = arith.mulf %124, %126 : vector<16x128xf32>
    %c3_88 = arith.constant 3 : index
    %c0_89 = arith.constant 0 : index
    %c0_90 = arith.constant 0 : index
    %128 = vector.load %arg6[%c3_88, %c0_89, %c0_90] : memref<4x16x128xf32, #tpu.memory_space<vmem>>, vector<1x16x128xf32>
    %129 = vector.shape_cast %128 : vector<1x16x128xf32> to vector<16x128xf32>
    %130 = vector.shape_cast %127 : vector<16x128xf32> to vector<1x16x128xf32>
    tpu.vector_store %arg6[%c3_88, %c0_89, %c0_90], %130 {strides = array<i32>} : memref<4x16x128xf32, #tpu.memory_space<vmem>>, vector<1x16x128xf32>,
    %c3_91 = arith.constant 3 : index
    %c0_92 = arith.constant 0 : index
    %c0_93 = arith.constant 0 : index
    %131 = vector.load %arg1[%c3_91, %c0_92, %c0_93] : memref<4x32x128xf32, #tpu.memory_space<vmem>>, vector<1x32x128xf32>
    %132 = vector.shape_cast %131 : vector<1x32x128xf32> to vector<32x128xf32>
    %133 = vector.extract_strided_slice %122 {offsets = [0, 128], sizes = [1, 128], strides = [1, 1]} : vector<1x256xf32> to vector<1x128xf32>
    %134 = vector.broadcast %133 : vector<1x128xf32> to vector<32x128xf32>
    %135 = arith.mulf %132, %134 : vector<32x128xf32>
    %c3_94 = arith.constant 3 : index
    %c0_95 = arith.constant 0 : index
    %c0_96 = arith.constant 0 : index
    %136 = vector.load %arg7[%c3_94, %c0_95, %c0_96] : memref<4x32x128xf32, #tpu.memory_space<vmem>>, vector<1x32x128xf32>
    %137 = vector.shape_cast %136 : vector<1x32x128xf32> to vector<32x128xf32>
    %138 = vector.shape_cast %135 : vector<32x128xf32> to vector<1x32x128xf32>
    tpu.vector_store %arg7[%c3_94, %c0_95, %c0_96], %138 {strides = array<i32>} : memref<4x32x128xf32, #tpu.memory_space<vmem>>, vector<1x32x128xf32>,
    return
  }
}

</mosaic_0001>

<llo_original>
// kernel: tpu_custom_call.1
$region0: #{tpu_custom_call.1}
  #allocation0 [shape = 'u32[]', space=smem, size = 0x4, offset = 0x4, fixed_abs, tag = 'smem constant byte address 0x4 - core index']
  #allocation1 [shape = 'u32[144,128]{1,0:T(1,128)}', space=vmem, size = 0x12000, scoped, tag = 'internal scratch']
  %s0 = inlined_call_operand.hbm [shape: f32[4,16,128], index: 0, kind: input, shape index: {}]
  %s1 = inlined_call_operand.hbm [shape: f32[4,32,128], index: 1, kind: input, shape index: {}]
  %s2 = inlined_call_operand.hbm [shape: f32[256,128], index: 2, kind: input, shape index: {}]
  %s3 = inlined_call_operand.vmem [shape: f32[1,128], index: 3, kind: input, shape index: {}]
  %s4 = inlined_call_operand.hbm [shape: f32[128,256], index: 4, kind: input, shape index: {}]
  %s5 = inlined_call_operand.vmem [shape: f32[1,256], index: 5, kind: input, shape index: {}]
  %s6 = inlined_call_operand.hbm [shape: f32[4,16,128], index: 6, kind: output, shape index: {0}]
  %s7 = inlined_call_operand.hbm [shape: f32[4,32,128], index: 7, kind: output, shape index: {1}]
  %s8 = inlined_call_operand.hbm [shape: f32[4,256], index: 8, kind: output, shape index: {2}]
  %9 = xla_tuple %s6, %s7, %s8
  %s10 = sld [smem:[#allocation0]]
  $region66: #{tpu_custom_call.1} parent=0
    _
  %s12 = ssub.s32 1, %s10
  %s13 = scalar_select 0, %s12, %s10
  $region1: #{tpu_custom_call.1} parent=0
    #allocation2 [shape = 'u8[32768]{0}', space=vmem, size = 0x8000, scoped, tag = 'input window, operand 0, single buffered']
    #allocation3 [shape = 's32[1]{0}', space=sflag, size = 0x4, scoped, tag = 'scoped memory for tpu_custom_call.1']
    #allocation4 [shape = 's32[1]{0}', space=sflag, size = 0x4, scoped, tag = 'scoped memory for tpu_custom_call.1']
    #allocation5 [shape = 'u8[65536]{0}', space=vmem, size = 0x10000, scoped, tag = 'input window, operand 1, single buffered']
    #allocation6 [shape = 's32[1]{0}', space=sflag, size = 0x4, scoped, tag = 'scoped memory for tpu_custom_call.1']
    #allocation7 [shape = 'u8[131072]{0}', space=vmem, size = 0x20000, scoped, tag = 'input window, operand 2, single buffered']
    #allocation8 [shape = 'u8[131072]{0}', space=vmem, size = 0x20000, scoped, tag = 'input window, operand 4, single buffered']
    #allocation9 [shape = 's32[1]{0}', space=sflag, size = 0x4, scoped, tag = 'scoped memory for tpu_custom_call.1']
    #allocation10 [shape = 'u8[32768]{0}', space=vmem, size = 0x8000, scoped, tag = 'output window, operand 0, single buffered']
    #allocation11 [shape = 'u8[65536]{0}', space=vmem, size = 0x10000, scoped, tag = 'output window, operand 1, single buffered']
    #allocation12 [shape = 's32[1]{0}', space=sflag, size = 0x4, scoped, tag = 'scoped memory for tpu_custom_call.1']
    #allocation13 [shape = 'u8[4096]{0}', space=vmem, size = 0x1000, scoped, tag = 'output window, operand 2, single buffered']
    %14 = vsyncpa [#allocation3], 0
    %15 = vsyncpa [#allocation6], 0
    %16 = vsyncpa [#allocation9], 0
    %17 = vsyncpa [#allocation4], 0
    %18 = vsyncpa [#allocation12], 0
    // Predicated region
    $region2: #{tpu_custom_call.1} parent=1 // pred_check
      _
    $region3: #{tpu_custom_call.1} parent=1 // pred_check_branch
      %20 = sbr.rel (0) target = $region5
    $region4: #{tpu_custom_call.1} parent=1 // pred_region
      %s22 = ssub.s32 1024, 1024
      %23 = vsyncadd [#allocation3], %s22
      %s24 = sshll.u32 [#allocation2], 4
      %s25 = int_to_ptr.vmem [resolvable:$true] %s24
      %30 = dma.hbm_to_vmem [thread:$0]  %s0, 1024, %s25, [#allocation3], 128, 128, 8
    $region5: #{tpu_custom_call.1} parent=1 // pred_fallthru
      _
    // Predicated region
    $region6: #{tpu_custom_call.1} parent=1 // pred_check
      _
    $region7: #{tpu_custom_call.1} parent=1 // pred_check_branch
      %32 = sbr.rel (0) target = $region9
    $region8: #{tpu_custom_call.1} parent=1 // pred_region
      %s34 = ssub.s32 2048, 2048
      %35 = vsyncadd [#allocation6], %s34
      %s36 = sshll.u32 [#allocation5], 4
      %s37 = int_to_ptr.vmem [resolvable:$true] %s36
      %42 = dma.hbm_to_vmem [thread:$0]  %s1, 2048, %s37, [#allocation6], 128, 128, 8
    $region9: #{tpu_custom_call.1} parent=1 // pred_fallthru
      _
    // Predicated region
    $region10: #{tpu_custom_call.1} parent=1 // pred_check
      _
    $region11: #{tpu_custom_call.1} parent=1 // pred_check_branch
      %44 = sbr.rel (0) target = $region13
    $region12: #{tpu_custom_call.1} parent=1 // pred_region
      %s46 = ssub.s32 4096, 4096
      %47 = vsyncadd [#allocation6], %s46
      %s48 = sshll.u32 [#allocation7], 4
      %s49 = int_to_ptr.vmem [resolvable:$true] %s48
      %54 = dma.hbm_to_vmem [thread:$0]  %s2, 4096, %s49, [#allocation6], 128, 128, 8
    $region13: #{tpu_custom_call.1} parent=1 // pred_fallthru
      _
    // Predicated region
    $region14: #{tpu_custom_call.1} parent=1 // pred_check
      _
    $region15: #{tpu_custom_call.1} parent=1 // pred_check_branch
      %56 = sbr.rel (0) target = $region17
    $region16: #{tpu_custom_call.1} parent=1 // pred_region
      _
    $region17: #{tpu_custom_call.1} parent=1 // pred_fallthru
      _
    // Predicated region
    $region18: #{tpu_custom_call.1} parent=1 // pred_check
      _
    $region19: #{tpu_custom_call.1} parent=1 // pred_check_branch
      %58 = sbr.rel (0) target = $region21
    $region20: #{tpu_custom_call.1} parent=1 // pred_region
      %s60 = ssub.s32 4096, 4096
      %61 = vsyncadd [#allocation9], %s60
      %s62 = sshll.u32 [#allocation8], 4
      %s63 = int_to_ptr.vmem [resolvable:$true] %s62
      %68 = dma.hbm_to_vmem [thread:$0]  %s4, 4096, %s63, [#allocation9], 256, 256, 16
    $region21: #{tpu_custom_call.1} parent=1 // pred_fallthru
      _
    // Predicated region
    $region22: #{tpu_custom_call.1} parent=1 // pred_check
      _
    $region23: #{tpu_custom_call.1} parent=1 // pred_check_branch
      %70 = sbr.rel (0) target = $region25
    $region24: #{tpu_custom_call.1} parent=1 // pred_region
      _
    $region25: #{tpu_custom_call.1} parent=1 // pred_fallthru
      _
    // Predicated region
    $region26: #{tpu_custom_call.1} parent=1 // pred_check
      _
    $region27: #{tpu_custom_call.1} parent=1 // pred_check_branch
      %72 = sbr.rel (0) target = $region29
    $region28: #{tpu_custom_call.1} parent=1 // pred_region
      %73 = dma.done [#allocation3], 1024
    $region29: #{tpu_custom_call.1} parent=1 // pred_fallthru
      _
    // Predicated region
    $region30: #{tpu_custom_call.1} parent=1 // pred_check
      _
    $region31: #{tpu_custom_call.1} parent=1 // pred_check_branch
      %75 = sbr.rel (0) target = $region33
    $region32: #{tpu_custom_call.1} parent=1 // pred_region
      %76 = dma.done [#allocation6], 2048
    $region33: #{tpu_custom_call.1} parent=1 // pred_fallthru
      _
    // Predicated region
    $region34: #{tpu_custom_call.1} parent=1 // pred_check
      _
    $region35: #{tpu_custom_call.1} parent=1 // pred_check_branch
      %78 = sbr.rel (0) target = $region37
    $region36: #{tpu_custom_call.1} parent=1 // pred_region
      %79 = dma.done [#allocation6], 4096
    $region37: #{tpu_custom_call.1} parent=1 // pred_fallthru
      _
    // Predicated region
    $region38: #{tpu_custom_call.1} parent=1 // pred_check
      _
    $region39: #{tpu_custom_call.1} parent=1 // pred_check_branch
      %81 = sbr.rel (0) target = $region41
    $region40: #{tpu_custom_call.1} parent=1 // pred_region
      %82 = dma.done [#allocation9], 4096
    $region41: #{tpu_custom_call.1} parent=1 // pred_fallthru
      _
    %v83 = vld [vmem:[#allocation2] sm:$0xff]
    %v84 = vld [vmem:[#allocation2 + $0x8] sm:$0xff]
    %v85 = vadd.f32 %v83, %v84
    %v86 = vrot.slane %v85, 4
    %v87 = vadd.f32 %v85, %v86
    %v88 = vrot.slane %v87, 2
    %v89 = vadd.f32 %v87, %v88
    %v90 = vrot.slane %v89, 1
    %v91 = vadd.f32 %v89, %v90
    %v92 = vmul.f32 %v91, 0.0625
    %v93 = vld [vmem:[#allocation5] sm:$0xff]
    %v94 = vld [vmem:[#allocation5 + $0x8] sm:$0xff]
    %v95 = vld [vmem:[#allocation5 + $0x10] sm:$0xff]
    %v96 = vld [vmem:[#allocation5 + $0x18] sm:$0xff]
    %v97 = vadd.f32 %v93, %v94
    %v98 = vadd.f32 %v97, %v95
    %v99 = vadd.f32 %v98, %v96
    %v100 = vrot.slane %v99, 4
    %v101 = vadd.f32 %v99, %v100
    %v102 = vrot.slane %v101, 2
    %v103 = vadd.f32 %v101, %v102
    %v104 = vrot.slane %v103, 1
    %v105 = vadd.f32 %v103, %v104
    %v106 = vmul.f32 %v105, 0.03125
    %s107 = scalar_lea.vmem [#allocation2], 16
    %v108 = vld [vmem:[%s107] sm:$0xff]
    %v109 = vld [vmem:[%s107 + $0x8] sm:$0xff]
    %v110 = vadd.f32 %v108, %v109
    %v111 = vrot.slane %v110, 4
    %v112 = vadd.f32 %v110, %v111
    %v113 = vrot.slane %v112, 2
    %v114 = vadd.f32 %v112, %v113
    %v115 = vrot.slane %v114, 1
    %v116 = vadd.f32 %v114, %v115
    %v117 = vmul.f32 %v116, 0.0625
    %s118 = scalar_lea.vmem [#allocation5], 32
    %v119 = vld [vmem:[%s118] sm:$0xff]
    %v120 = vld [vmem:[%s118 + $0x8] sm:$0xff]
    %v121 = vld [vmem:[%s118 + $0x10] sm:$0xff]
    %v122 = vld [vmem:[%s118 + $0x18] sm:$0xff]
    %v123 = vadd.f32 %v119, %v120
    %v124 = vadd.f32 %v123, %v121
    %v125 = vadd.f32 %v124, %v122
    %v126 = vrot.slane %v125, 4
    %v127 = vadd.f32 %v125, %v126
    %v128 = vrot.slane %v127, 2
    %v129 = vadd.f32 %v127, %v128
    %v130 = vrot.slane %v129, 1
    %v131 = vadd.f32 %v129, %v130
    %v132 = vmul.f32 %v131, 0.03125
    %s133 = scalar_lea.vmem [#allocation2], 32
    %v134 = vld [vmem:[%s133] sm:$0xff]
    %v135 = vld [vmem:[%s133 + $0x8] sm:$0xff]
    %v136 = vadd.f32 %v134, %v135
    %v137 = vrot.slane %v136, 4
    %v138 = vadd.f32 %v136, %v137
    %v139 = vrot.slane %v138, 2
    %v140 = vadd.f32 %v138, %v139
    %v141 = vrot.slane %v140, 1
    %v142 = vadd.f32 %v140, %v141
    %v143 = vmul.f32 %v142, 0.0625
    %s144 = scalar_lea.vmem [#allocation5], 64
    %v145 = vld [vmem:[%s144] sm:$0xff]
    %v146 = vld [vmem:[%s144 + $0x8] sm:$0xff]
    %v147 = vld [vmem:[%s144 + $0x10] sm:$0xff]
    %v148 = vld [vmem:[%s144 + $0x18] sm:$0xff]
    %v149 = vadd.f32 %v145, %v146
    %v150 = vadd.f32 %v149, %v147
    %v151 = vadd.f32 %v150, %v148
    %v152 = vrot.slane %v151, 4
    %v153 = vadd.f32 %v151, %v152
    %v154 = vrot.slane %v153, 2
    %v155 = vadd.f32 %v153, %v154
    %v156 = vrot.slane %v155, 1
    %v157 = vadd.f32 %v155, %v156
    %v158 = vmul.f32 %v157, 0.03125
    %s159 = scalar_lea.vmem [#allocation2], 48
    %v160 = vld [vmem:[%s159] sm:$0xff]
    %v161 = vld [vmem:[%s159 + $0x8] sm:$0xff]
    %v162 = vadd.f32 %v160, %v161
    %v163 = vrot.slane %v162, 4
    %v164 = vadd.f32 %v162, %v163
    %v165 = vrot.slane %v164, 2
    %v166 = vadd.f32 %v164, %v165
    %v167 = vrot.slane %v166, 1
    %v168 = vadd.f32 %v166, %v167
    %v169 = vmul.f32 %v168, 0.0625
    %s170 = scalar_lea.vmem [#allocation5], 96
    %v171 = vld [vmem:[%s170] sm:$0xff]
    %v172 = vld [vmem:[%s170 + $0x8] sm:$0xff]
    %v173 = vld [vmem:[%s170 + $0x10] sm:$0xff]
    %v174 = vld [vmem:[%s170 + $0x18] sm:$0xff]
    %v175 = vadd.f32 %v171, %v172
    %v176 = vadd.f32 %v175, %v173
    %v177 = vadd.f32 %v176, %v174
    %v178 = vrot.slane %v177, 4
    %v179 = vadd.f32 %v177, %v178
    %v180 = vrot.slane %v179, 2
    %v181 = vadd.f32 %v179, %v180
    %v182 = vrot.slane %v181, 1
    %v183 = vadd.f32 %v181, %v182
    %v184 = vmul.f32 %v183, 0.03125
    %v187 = vrot.slane %v117, 7
    %v188 = vrot.slane %v132, 7
    %v193 = vrot.slane %v143, 6
    %v194 = vrot.slane %v158, 6
    %v199 = vrot.slane %v169, 5
    %v200 = vrot.slane %v184, 5
    %vm203 = vcmask 1040384
    %v204 = vsel %vm203, %v92, %v187
    %v205 = vsel %vm203, %v106, %v188
    %vm206 = vcmask 1041408
    %v207 = vsel %vm206, %v204, %v193
    %v208 = vsel %vm206, %v205, %v194
    %vm209 = vcmask 1042432
    %v210 = vsel %vm209, %v207, %v199
    %v211 = vsel %vm209, %v208, %v200
    %v212 = vld [vmem:[#allocation7] sm:$0xff]
    %v213 = vld [vmem:[#allocation7 + $0x8] sm:$0xff]
    %v214 = vld [vmem:[#allocation7 + $0x10] sm:$0xff]
    %v215 = vld [vmem:[#allocation7 + $0x18] sm:$0xff]
    %v216 = vld [vmem:[#allocation7 + $0x20] sm:$0xff]
    %v217 = vld [vmem:[#allocation7 + $0x28] sm:$0xff]
    %v218 = vld [vmem:[#allocation7 + $0x30] sm:$0xff]
    %v219 = vld [vmem:[#allocation7 + $0x38] sm:$0xff]
    %v220 = vld [vmem:[#allocation7 + $0x40] sm:$0xff]
    %v221 = vld [vmem:[#allocation7 + $0x48] sm:$0xff]
    %v222 = vld [vmem:[#allocation7 + $0x50] sm:$0xff]
    %v223 = vld [vmem:[#allocation7 + $0x58] sm:$0xff]
    %v224 = vld [vmem:[#allocation7 + $0x60] sm:$0xff]
    %v225 = vld [vmem:[#allocation7 + $0x68] sm:$0xff]
    %v226 = vld [vmem:[#allocation7 + $0x70] sm:$0xff]
    %v227 = vld [vmem:[#allocation7 + $0x78] sm:$0xff]
    %v228 = vld [vmem:[#allocation7 + $0x80] sm:$0xff]
    %v229 = vld [vmem:[#allocation7 + $0x88] sm:$0xff]
    %v230 = vld [vmem:[#allocation7 + $0x90] sm:$0xff]
    %v231 = vld [vmem:[#allocation7 + $0x98] sm:$0xff]
    %v232 = vld [vmem:[#allocation7 + $0xa0] sm:$0xff]
    %v233 = vld [vmem:[#allocation7 + $0xa8] sm:$0xff]
    %v234 = vld [vmem:[#allocation7 + $0xb0] sm:$0xff]
    %v235 = vld [vmem:[#allocation7 + $0xb8] sm:$0xff]
    %v236 = vld [vmem:[#allocation7 + $0xc0] sm:$0xff]
    %v237 = vld [vmem:[#allocation7 + $0xc8] sm:$0xff]
    %v238 = vld [vmem:[#allocation7 + $0xd0] sm:$0xff]
    %v239 = vld [vmem:[#allocation7 + $0xd8] sm:$0xff]
    %v240 = vld [vmem:[#allocation7 + $0xe0] sm:$0xff]
    %v241 = vld [vmem:[#allocation7 + $0xe8] sm:$0xff]
    %v242 = vld [vmem:[#allocation7 + $0xf0] sm:$0xff]
    %v243 = vld [vmem:[#allocation7 + $0xf8] sm:$0xff]
    %v244 = vld [vmem:[%s3] sm:$0x1]
    %v246 = vlaneseq
    %v247 = vshrl.u32 %v246, 7
    %v248 = vsub.s32 0, %v247
    %v249 = vrot.slane %v244, %v248
    %251 = vmatprep.subr.mxu0 0.0
    %252 = vmatpush1.msra.mxu0 %v212
    %253 = vmatprep.subr.mxu0 0.0
    %254 = vmatpush1.msra.mxu0 %v213
    %255 = vmatprep.subr.mxu0 0.0
    %256 = vmatpush1.msra.mxu0 %v214
    %257 = vmatprep.subr.mxu0 0.0
    %258 = vmatpush1.msra.mxu0 %v215
    %259 = vmatprep.subr.mxu0 0.0
    %260 = vmatpush1.msra.mxu0 %v216
    %261 = vmatprep.subr.mxu0 0.0
    %262 = vmatpush1.msra.mxu0 %v217
    %263 = vmatprep.subr.mxu0 0.0
    %264 = vmatpush1.msra.mxu0 %v218
    %265 = vmatprep.subr.mxu0 0.0
    %266 = vmatpush1.msra.mxu0 %v219
    %267 = vmatprep.subr.mxu0 0.0
    %268 = vmatpush1.msra.mxu0 %v220
    %269 = vmatprep.subr.mxu0 0.0
    %270 = vmatpush1.msra.mxu0 %v221
    %271 = vmatprep.subr.mxu0 0.0
    %272 = vmatpush1.msra.mxu0 %v222
    %273 = vmatprep.subr.mxu0 0.0
    %274 = vmatpush1.msra.mxu0 %v223
    %275 = vmatprep.subr.mxu0 0.0
    %276 = vmatpush1.msra.mxu0 %v224
    %277 = vmatprep.subr.mxu0 0.0
    %278 = vmatpush1.msra.mxu0 %v225
    %279 = vmatprep.subr.mxu0 0.0
    %280 = vmatpush1.msra.mxu0 %v226
    %281 = vmatprep.subr.mxu0 0.0
    %282 = vmatpush1.msra.mxu0 %v227
    %283 = vmatprep.subr.mxu0 0.0
    %284 = vmatpush1.msra.mxu0 %v228
    %285 = vmatprep.subr.mxu0 0.0
    %286 = vmatpush1.msra.mxu0 %v229
    %287 = vmatprep.subr.mxu0 0.0
    %288 = vmatpush1.msra.mxu0 %v230
    %289 = vmatprep.subr.mxu0 0.0
    %290 = vmatpush1.msra.mxu0 %v231
    %291 = vmatprep.subr.mxu0 0.0
    %292 = vmatpush1.msra.mxu0 %v232
    %293 = vmatprep.subr.mxu0 0.0
    %294 = vmatpush1.msra.mxu0 %v233
    %295 = vmatprep.subr.mxu0 0.0
    %296 = vmatpush1.msra.mxu0 %v234
    %297 = vmatprep.subr.mxu0 0.0
    %298 = vmatpush1.msra.mxu0 %v235
    %299 = vmatprep.subr.mxu0 0.0
    %300 = vmatpush1.msra.mxu0 %v236
    %301 = vmatprep.subr.mxu0 0.0
    %302 = vmatpush1.msra.mxu0 %v237
    %303 = vmatprep.subr.mxu0 0.0
    %304 = vmatpush1.msra.mxu0 %v238
    %305 = vmatprep.subr.mxu0 0.0
    %306 = vmatpush1.msra.mxu0 %v239
    %307 = vmatprep.subr.mxu0 0.0
    %308 = vmatpush1.msra.mxu0 %v240
    %309 = vmatprep.subr.mxu0 0.0
    %310 = vmatpush1.msra.mxu0 %v241
    %311 = vmatprep.subr.mxu0 0.0
    %312 = vmatpush1.msra.mxu0 %v242
    %313 = vmatprep.subr.mxu0 0.0
    %314 = vmatpush1.msra.mxu0 %v243
    %315 = vmatprep.mubr.f32.mxu0 %v211
    %316 = vmatmul.mubr.f32.gmra.mrb[0].mxu0 %v210
    %v317 = vpop.f32.mrb[0].mxu0
    %v318 = vadd.f32 %v249, %v317
    %v319 = vpop.f32.mrb[0].mxu0
    %320 = vdwg.mxu0
    %v321 = vmax.f32 %v318, 0.0
    %v322 = vld [vmem:[#allocation8] sm:$0xff]
    %v323 = vld [vmem:[#allocation8 + $0x8] sm:$0xff]
    %v324 = vld [vmem:[#allocation8 + $0x10] sm:$0xff]
    %v325 = vld [vmem:[#allocation8 + $0x18] sm:$0xff]
    %v326 = vld [vmem:[#allocation8 + $0x20] sm:$0xff]
    %v327 = vld [vmem:[#allocation8 + $0x28] sm:$0xff]
    %v328 = vld [vmem:[#allocation8 + $0x30] sm:$0xff]
    %v329 = vld [vmem:[#allocation8 + $0x38] sm:$0xff]
    %v330 = vld [vmem:[#allocation8 + $0x40] sm:$0xff]
    %v331 = vld [vmem:[#allocation8 + $0x48] sm:$0xff]
    %v332 = vld [vmem:[#allocation8 + $0x50] sm:$0xff]
    %v333 = vld [vmem:[#allocation8 + $0x58] sm:$0xff]
    %v334 = vld [vmem:[#allocation8 + $0x60] sm:$0xff]
    %v335 = vld [vmem:[#allocation8 + $0x68] sm:$0xff]
    %v336 = vld [vmem:[#allocation8 + $0x70] sm:$0xff]
    %v337 = vld [vmem:[#allocation8 + $0x78] sm:$0xff]
    %v338 = vld [vmem:[#allocation8 + $0x80] sm:$0xff]
    %v339 = vld [vmem:[#allocation8 + $0x88] sm:$0xff]
    %v340 = vld [vmem:[#allocation8 + $0x90] sm:$0xff]
    %v341 = vld [vmem:[#allocation8 + $0x98] sm:$0xff]
    %v342 = vld [vmem:[#allocation8 + $0xa0] sm:$0xff]
    %v343 = vld [vmem:[#allocation8 + $0xa8] sm:$0xff]
    %v344 = vld [vmem:[#allocation8 + $0xb0] sm:$0xff]
    %v345 = vld [vmem:[#allocation8 + $0xb8] sm:$0xff]
    %v346 = vld [vmem:[#allocation8 + $0xc0] sm:$0xff]
    %v347 = vld [vmem:[#allocation8 + $0xc8] sm:$0xff]
    %v348 = vld [vmem:[#allocation8 + $0xd0] sm:$0xff]
    %v349 = vld [vmem:[#allocation8 + $0xd8] sm:$0xff]
    %v350 = vld [vmem:[#allocation8 + $0xe0] sm:$0xff]
    %v351 = vld [vmem:[#allocation8 + $0xe8] sm:$0xff]
    %v352 = vld [vmem:[#allocation8 + $0xf0] sm:$0xff]
    %v353 = vld [vmem:[#allocation8 + $0xf8] sm:$0xff]
    %v354 = vld [vmem:[%s5] sm:$0x3]
    %v356 = vlaneseq
    %v357 = vshrl.u32 %v356, 7
    %v358 = vsub.s32 0, %v357
    %v359 = vrot.slane %v354, %v358
    %v360 = vlaneseq
    %v361 = vshrl.u32 %v360, 7
    %v362 = vsub.s32 1, %v361
    %v363 = vrot.slane %v354, %v362
    %366 = vmatprep.subr.mxu0 %v323
    %367 = vmatpush1.msra.mxu0 %v322
    %368 = vmatprep.subr.mxu0 %v325
    %369 = vmatpush1.msra.mxu0 %v324
    %370 = vmatprep.subr.mxu0 %v327
    %371 = vmatpush1.msra.mxu0 %v326
    %372 = vmatprep.subr.mxu0 %v329
    %373 = vmatpush1.msra.mxu0 %v328
    %374 = vmatprep.subr.mxu0 %v331
    %375 = vmatpush1.msra.mxu0 %v330
    %376 = vmatprep.subr.mxu0 %v333
    %377 = vmatpush1.msra.mxu0 %v332
    %378 = vmatprep.subr.mxu0 %v335
    %379 = vmatpush1.msra.mxu0 %v334
    %380 = vmatprep.subr.mxu0 %v337
    %381 = vmatpush1.msra.mxu0 %v336
    %382 = vmatprep.subr.mxu0 %v339
    %383 = vmatpush1.msra.mxu0 %v338
    %384 = vmatprep.subr.mxu0 %v341
    %385 = vmatpush1.msra.mxu0 %v340
    %386 = vmatprep.subr.mxu0 %v343
    %387 = vmatpush1.msra.mxu0 %v342
    %388 = vmatprep.subr.mxu0 %v345
    %389 = vmatpush1.msra.mxu0 %v344
    %390 = vmatprep.subr.mxu0 %v347
    %391 = vmatpush1.msra.mxu0 %v346
    %392 = vmatprep.subr.mxu0 %v349
    %393 = vmatpush1.msra.mxu0 %v348
    %394 = vmatprep.subr.mxu0 %v351
    %395 = vmatpush1.msra.mxu0 %v350
    %396 = vmatprep.subr.mxu0 %v353
    %397 = vmatpush1.msra.mxu0 %v352
    %398 = vmatprep.subr.mxu0 0.0
    %399 = vmatpush1.msra.mxu0 0.0
    %400 = vmatprep.subr.mxu0 0.0
    %401 = vmatpush1.msra.mxu0 0.0
    %402 = vmatprep.subr.mxu0 0.0
    %403 = vmatpush1.msra.mxu0 0.0
    %404 = vmatprep.subr.mxu0 0.0
    %405 = vmatpush1.msra.mxu0 0.0
    %406 = vmatprep.subr.mxu0 0.0
    %407 = vmatpush1.msra.mxu0 0.0
    %408 = vmatprep.subr.mxu0 0.0
    %409 = vmatpush1.msra.mxu0 0.0
    %410 = vmatprep.subr.mxu0 0.0
    %411 = vmatpush1.msra.mxu0 0.0
    %412 = vmatprep.subr.mxu0 0.0
    %413 = vmatpush1.msra.mxu0 0.0
    %414 = vmatprep.subr.mxu0 0.0
    %415 = vmatpush1.msra.mxu0 0.0
    %416 = vmatprep.subr.mxu0 0.0
    %417 = vmatpush1.msra.mxu0 0.0
    %418 = vmatprep.subr.mxu0 0.0
    %419 = vmatpush1.msra.mxu0 0.0
    %420 = vmatprep.subr.mxu0 0.0
    %421 = vmatpush1.msra.mxu0 0.0
    %422 = vmatprep.subr.mxu0 0.0
    %423 = vmatpush1.msra.mxu0 0.0
    %424 = vmatprep.subr.mxu0 0.0
    %425 = vmatpush1.msra.mxu0 0.0
    %426 = vmatprep.subr.mxu0 0.0
    %427 = vmatpush1.msra.mxu0 0.0
    %428 = vmatprep.subr.mxu0 0.0
    %429 = vmatpush1.msra.mxu0 0.0
    %430 = vmatprep.mubr.f32.mxu0 0.0
    %431 = vmatmul.mubr.f32.gmra.mrb[0].mxu0 %v321
    %v432 = vpop.f32.mrb[0].mxu0
    %v433 = vadd.f32 %v359, %v432
    %v434 = vpop.f32.mrb[0].mxu0
    %v435 = vadd.f32 %v363, %v434
    %436 = vdwg.mxu0
    %v437 = vxor.u32 %v433, 2147483648
    %v438 = vxor.u32 %v435, 2147483648
    %v439 = vmul.f32 %v437, 1.442695
    %v440 = vpow.pop %v439
    %v441 = vmul.f32 %v438, 1.442695
    %v442 = vpow.pop %v441
    %v443 = vadd.f32 %v440, 1.0
    %v444 = vadd.f32 %v442, 1.0
    %v445 = vrcp.pop %v443
    %v446 = vmul.f32 1.0, %v445
    %v447 = vrcp.pop %v444
    %v448 = vmul.f32 1.0, %v447
    %v451 = vcombine.low %v446, %v448
    %453 = vst [vmem:[#allocation13] sm:$0xff] %v451
    %v454 = vld [vmem:[#allocation2] sm:$0xff]
    %v455 = vld [vmem:[#allocation2 + $0x8] sm:$0xff]
    %v456 = vlaneseq
    %v457 = vshrl.u32 %v456, 7
    %v458 = vsub.s32 0, %v457
    %v459 = vrot.slane %v446, %v458
    %v460 = vmul.f32 %v454, %v459
    %v461 = vmul.f32 %v455, %v459
    %462 = vst [vmem:[#allocation10] sm:$0xff] %v460
    %463 = vst [vmem:[#allocation10 + $0x8] sm:$0xff] %v461
    %v464 = vld [vmem:[#allocation5] sm:$0xff]
    %v465 = vld [vmem:[#allocation5 + $0x8] sm:$0xff]
    %v466 = vld [vmem:[#allocation5 + $0x10] sm:$0xff]
    %v467 = vld [vmem:[#allocation5 + $0x18] sm:$0xff]
    %v468 = vlaneseq
    %v469 = vshrl.u32 %v468, 7
    %v470 = vsub.s32 0, %v469
    %v471 = vrot.slane %v448, %v470
    %v472 = vmul.f32 %v464, %v471
    %v473 = vmul.f32 %v465, %v471
    %v474 = vmul.f32 %v466, %v471
    %v475 = vmul.f32 %v467, %v471
    %476 = vst [vmem:[#allocation11] sm:$0xff] %v472
    %477 = vst [vmem:[#allocation11 + $0x8] sm:$0xff] %v473
    %478 = vst [vmem:[#allocation11 + $0x10] sm:$0xff] %v474
    %479 = vst [vmem:[#allocation11 + $0x18] sm:$0xff] %v475
    %v480 = vld [vmem:[%s107] sm:$0xff]
    %v481 = vld [vmem:[%s107 + $0x8] sm:$0xff]
    %v482 = vlaneseq
    %v483 = vshrl.u32 %v482, 7
    %v484 = vsub.s32 1, %v483
    %v485 = vrot.slane %v446, %v484
    %v486 = vmul.f32 %v480, %v485
    %v487 = vmul.f32 %v481, %v485
    %s488 = scalar_lea.vmem [#allocation10], 16
    %489 = vst [vmem:[%s488] sm:$0xff] %v486
    %490 = vst [vmem:[%s488 + $0x8] sm:$0xff] %v487
    %v491 = vld [vmem:[%s118] sm:$0xff]
    %v492 = vld [vmem:[%s118 + $0x8] sm:$0xff]
    %v493 = vld [vmem:[%s118 + $0x10] sm:$0xff]
    %v494 = vld [vmem:[%s118 + $0x18] sm:$0xff]
    %v495 = vlaneseq
    %v496 = vshrl.u32 %v495, 7
    %v497 = vsub.s32 1, %v496
    %v498 = vrot.slane %v448, %v497
    %v499 = vmul.f32 %v491, %v498
    %v500 = vmul.f32 %v492, %v498
    %v501 = vmul.f32 %v493, %v498
    %v502 = vmul.f32 %v494, %v498
    %s503 = scalar_lea.vmem [#allocation11], 32
    %504 = vst [vmem:[%s503] sm:$0xff] %v499
    %505 = vst [vmem:[%s503 + $0x8] sm:$0xff] %v500
    %506 = vst [vmem:[%s503 + $0x10] sm:$0xff] %v501
    %507 = vst [vmem:[%s503 + $0x18] sm:$0xff] %v502
    %v508 = vld [vmem:[%s133] sm:$0xff]
    %v509 = vld [vmem:[%s133 + $0x8] sm:$0xff]
    %v510 = vlaneseq
    %v511 = vshrl.u32 %v510, 7
    %v512 = vsub.s32 2, %v511
    %v513 = vrot.slane %v446, %v512
    %v514 = vmul.f32 %v508, %v513
    %v515 = vmul.f32 %v509, %v513
    %s516 = scalar_lea.vmem [#allocation10], 32
    %517 = vst [vmem:[%s516] sm:$0xff] %v514
    %518 = vst [vmem:[%s516 + $0x8] sm:$0xff] %v515
    %v519 = vld [vmem:[%s144] sm:$0xff]
    %v520 = vld [vmem:[%s144 + $0x8] sm:$0xff]
    %v521 = vld [vmem:[%s144 + $0x10] sm:$0xff]
    %v522 = vld [vmem:[%s144 + $0x18] sm:$0xff]
    %v523 = vlaneseq
    %v524 = vshrl.u32 %v523, 7
    %v525 = vsub.s32 2, %v524
    %v526 = vrot.slane %v448, %v525
    %v527 = vmul.f32 %v519, %v526
    %v528 = vmul.f32 %v520, %v526
    %v529 = vmul.f32 %v521, %v526
    %v530 = vmul.f32 %v522, %v526
    %s531 = scalar_lea.vmem [#allocation11], 64
    %532 = vst [vmem:[%s531] sm:$0xff] %v527
    %533 = vst [vmem:[%s531 + $0x8] sm:$0xff] %v528
    %534 = vst [vmem:[%s531 + $0x10] sm:$0xff] %v529
    %535 = vst [vmem:[%s531 + $0x18] sm:$0xff] %v530
    %v536 = vld [vmem:[%s159] sm:$0xff]
    %v537 = vld [vmem:[%s159 + $0x8] sm:$0xff]
    %v538 = vlaneseq
    %v539 = vshrl.u32 %v538, 7
    %v540 = vsub.s32 3, %v539
    %v541 = vrot.slane %v446, %v540
    %v542 = vmul.f32 %v536, %v541
    %v543 = vmul.f32 %v537, %v541
    %s544 = scalar_lea.vmem [#allocation10], 48
    %545 = vst [vmem:[%s544] sm:$0xff] %v542
    %546 = vst [vmem:[%s544 + $0x8] sm:$0xff] %v543
    %v547 = vld [vmem:[%s170] sm:$0xff]
    %v548 = vld [vmem:[%s170 + $0x8] sm:$0xff]
    %v549 = vld [vmem:[%s170 + $0x10] sm:$0xff]
    %v550 = vld [vmem:[%s170 + $0x18] sm:$0xff]
    %v551 = vlaneseq
    %v552 = vshrl.u32 %v551, 7
    %v553 = vsub.s32 3, %v552
    %v554 = vrot.slane %v448, %v553
    %v555 = vmul.f32 %v547, %v554
    %v556 = vmul.f32 %v548, %v554
    %v557 = vmul.f32 %v549, %v554
    %v558 = vmul.f32 %v550, %v554
    %s559 = scalar_lea.vmem [#allocation11], 96
    %560 = vst [vmem:[%s559] sm:$0xff] %v555
    %561 = vst [vmem:[%s559 + $0x8] sm:$0xff] %v556
    %562 = vst [vmem:[%s559 + $0x10] sm:$0xff] %v557
    %563 = vst [vmem:[%s559 + $0x18] sm:$0xff] %v558
    // Predicated region
    $region42: #{tpu_custom_call.1} parent=1 // pred_check
      _
    $region43: #{tpu_custom_call.1} parent=1 // pred_check_branch
      %565 = sbr.rel (0) target = $region45
    $region44: #{tpu_custom_call.1} parent=1 // pred_region
      %s567 = ssub.s32 1024, 1024
      %568 = vsyncadd [#allocation4], %s567
      %s569 = sshll.u32 [#allocation10], 4
      %s570 = int_to_ptr.vmem [resolvable:$true] %s569
      %575 = dma.vmem_to_hbm [thread:$0]  %s570, 1024, %s6, [#allocation4], 128, 128, 8
    $region45: #{tpu_custom_call.1} parent=1 // pred_fallthru
      _
    // Predicated region
    $region46: #{tpu_custom_call.1} parent=1 // pred_check
      _
    $region47: #{tpu_custom_call.1} parent=1 // pred_check_branch
      %577 = sbr.rel (0) target = $region49
    $region48: #{tpu_custom_call.1} parent=1 // pred_region
      %s579 = ssub.s32 2048, 2048
      %580 = vsyncadd [#allocation12], %s579
      %s581 = sshll.u32 [#allocation11], 4
      %s582 = int_to_ptr.vmem [resolvable:$true] %s581
      %587 = dma.vmem_to_hbm [thread:$0]  %s582, 2048, %s7, [#allocation12], 128, 128, 8
    $region49: #{tpu_custom_call.1} parent=1 // pred_fallthru
      _
    // Predicated region
    $region50: #{tpu_custom_call.1} parent=1 // pred_check
      _
    $region51: #{tpu_custom_call.1} parent=1 // pred_check_branch
      %589 = sbr.rel (0) target = $region53
    $region52: #{tpu_custom_call.1} parent=1 // pred_region
      %s591 = ssub.s32 128, 128
      %592 = vsyncadd [#allocation12], %s591
      %s594 = sshll.u32 [#allocation13], 4
      %s595 = int_to_ptr.vmem [resolvable:$true] %s594
      %597 = dma.vmem_to_hbm [thread:$0]  %s595, 128, %s8, [#allocation12]
    $region53: #{tpu_custom_call.1} parent=1 // pred_fallthru
      _
    // Predicated region
    $region54: #{tpu_custom_call.1} parent=1 // pred_check
      _
    $region55: #{tpu_custom_call.1} parent=1 // pred_check_branch
      %599 = sbr.rel (0) target = $region57
    $region56: #{tpu_custom_call.1} parent=1 // pred_region
      %600 = dma.done [#allocation4], 1024
    $region57: #{tpu_custom_call.1} parent=1 // pred_fallthru
      _
    // Predicated region
    $region58: #{tpu_custom_call.1} parent=1 // pred_check
      _
    $region59: #{tpu_custom_call.1} parent=1 // pred_check_branch
      %602 = sbr.rel (0) target = $region61
    $region60: #{tpu_custom_call.1} parent=1 // pred_region
      %603 = dma.done [#allocation12], 2048
    $region61: #{tpu_custom_call.1} parent=1 // pred_fallthru
      _
    // Predicated region
    $region62: #{tpu_custom_call.1} parent=1 // pred_check
      _
    $region63: #{tpu_custom_call.1} parent=1 // pred_check_branch
      %605 = sbr.rel (0) target = $region65
    $region64: #{tpu_custom_call.1} parent=1 // pred_region
      %606 = dma.done [#allocation12], 128
    $region65: #{tpu_custom_call.1} parent=1 // pred_fallthru
      _
    %607 = vsyncpa [#allocation3], 1
    %608 = vsyncpa [#allocation6], 1
    %609 = vsyncpa [#allocation9], 1
    %610 = vsyncpa [#allocation4], 1
    %611 = vsyncpa [#allocation12], 1

</llo_original>
